<compile_context>
chip_gen: v6e
topology: v6e:2x2x1
jax: 0.10.0
libtpu: 0.0.40
codegen_flags: <defaults>
</compile_context>

<pallas_src>
import functools

import jax
import jax.numpy as jnp
from jax.experimental import pallas as pl
from jax.experimental.pallas import tpu as pltpu

_LANE = 128          # vreg lane width (last-dim granularity)
_SUBLANE_BF16 = 16   # bf16 sublane packing (second-to-last-dim granularity)


def _round_up(x, m):
    return (x + m - 1) // m * m


@functools.lru_cache(maxsize=1)
def _vmem_budgets():
    """Returns (per-step tile budget, vmem_limit_bytes), generation-aware."""
    phys = 64 * 1024 * 1024  # conservative default (v7x per-TC VMEM)
    try:
        phys = int(pltpu.get_tpu_info().vmem_capacity_bytes)
    except Exception:
        pass
    if phys >= 96 * 1024 * 1024:                 # 128-MiB parts: v5e / v6e
        return 64 * 1024 * 1024, 96 * 1024 * 1024
    return 24 * 1024 * 1024, 32 * 1024 * 1024    # v7x (64 MiB physical)


def _largest_divisor_tile(dim, max_tile, granule):
    """Largest multiple of `granule` that is <= max_tile and divides `dim`."""
    t = min(dim, max_tile)
    t -= t % granule
    while t > granule and dim % t != 0:
        t -= granule
    return max(t, granule)


def _pick_tm(b_cap, per_tm_bytes, fixed_bytes, budget, desired):
    """Largest tm (multiple of 16, <= b_cap) fitting the VMEM budget.

    Shrinking stops at min(256, b_cap): below that the MXU M-dimension is
    underfilled, so VMEM pressure should be relieved via tk / K steps instead.
    """
    tm = min(_round_up(desired, _SUBLANE_BF16), b_cap)
    tm = max(tm - tm % _SUBLANE_BF16, _SUBLANE_BF16)
    floor = min(256, b_cap)
    floor = max(floor - floor % _SUBLANE_BF16, _SUBLANE_BF16)
    while fixed_bytes + tm * per_tm_bytes > budget and tm > floor:
        half = (tm // 2) - (tm // 2) % _SUBLANE_BF16
        tm = max(half, floor)
    return tm


def _choose_config(batch, d_in_p, h_p, n_p, budget, block_b, block_k,
                   force_k_tiling):
    """Returns (fused, tm, tk)."""
    b_cap = _round_up(batch, _SUBLANE_BF16)
    bias_bytes = 2 * (h_p + n_p) * 4                       # f32, double-buffered

    if not force_k_tiling:
        # Fused (no K axis) path: both weight matrices resident per encoder.
        w_fixed = 2 * (d_in_p * h_p + h_p * n_p) * 2 + bias_bytes
        per_tm = (2 * d_in_p * 2        # x tile (bf16, double-buffered)
                  + 2 * n_p * 4         # out tile (f32, double-buffered)
                  + h_p * 4 + h_p * 2)  # hidden f32 temp + bf16 copy
        if w_fixed <= budget // 2:
            tm = _pick_tm(b_cap, per_tm, w_fixed, budget, block_b)
            if w_fixed + tm * per_tm <= budget:
                return True, tm, d_in_p

    # K-tiled fallback (large D_in): stream W1 over a K reduction axis.
    tk = _largest_divisor_tile(d_in_p, block_k, _LANE)

    def k_fixed(t):
        return 2 * (t * h_p + h_p * n_p) * 2 + bias_bytes

    while k_fixed(tk) > budget // 2 and tk > _LANE:
        tk = _largest_divisor_tile(d_in_p, tk // 2, _LANE)
    per_tm = (2 * tk * 2                # x tile (bf16, double-buffered)
              + 2 * n_p * 4             # out tile (f32, double-buffered)
              + h_p * 4 + h_p * 2)      # f32 accumulator scratch + bf16 copy
    tm = _pick_tm(b_cap, per_tm, k_fixed(tk), budget, block_b)
    return False, tm, tk


def _mlp_kernel_fused(x_ref, w1_ref, b1_ref, w2_ref, b2_ref, o_ref):
    """Straight-line 2-layer MLP tile (no K grid axis).

    grid = (E, B_tiles). Ref shapes (leading encoder axis is a size-1 block):
      x_ref  : (1, tm, Dp)  bf16
      w1_ref : (1, Dp, Hp)  bf16
      b1_ref : (1, 1,  Hp)  f32
      w2_ref : (1, Hp, Np)  bf16
      b2_ref : (1, 1,  Np)  f32
      o_ref  : (1, tm, Np)  f32
    """
    h = jnp.dot(x_ref[0], w1_ref[0], preferred_element_type=jnp.float32)
    h = jnp.maximum(h + b1_ref[0], 0.0)
    y = jnp.dot(h.astype(jnp.bfloat16), w2_ref[0],
                preferred_element_type=jnp.float32) + b2_ref[0]
    o_ref[0] = y.astype(o_ref.dtype)


def _mlp_kernel_ktiled(x_ref, w1_ref, b1_ref, w2_ref, b2_ref, o_ref, h_acc):
    """K-tiled 2-layer MLP tile. grid = (E, B_tiles, K_tiles), K = D_in.

      x_ref  : (1, tm, tk)  bf16
      w1_ref : (1, tk, Hp)  bf16
      b1_ref : (1, 1,  Hp)  f32
      w2_ref : (1, Hp, Np)  bf16
      b2_ref : (1, 1,  Np)  f32
      o_ref  : (1, tm, Np)  f32
      h_acc  : (tm, Hp)     f32 VMEM scratch (first-matmul accumulator)
    """
    k = pl.program_id(2)

    @pl.when(k == 0)
    def _():
        # Seed the accumulator with the broadcast bias: removes the bias add
        # from the serial epilogue between the two matmuls.
        h_acc[...] = jnp.broadcast_to(b1_ref[0], h_acc.shape)

    h_acc[...] += jnp.dot(x_ref[0], w1_ref[0],
                          preferred_element_type=jnp.float32)

    @pl.when(k == pl.num_programs(2) - 1)
    def _():
        h = jnp.maximum(h_acc[...], 0.0)
        y = jnp.dot(h.astype(jnp.bfloat16), w2_ref[0],
                    preferred_element_type=jnp.float32) + b2_ref[0]
        o_ref[0] = y.astype(o_ref.dtype)


def prepare_encoder_params(params_A, params_B):
    """Stack + pad (lane-dense) + cast both encoders' params ONCE.

    Returns ((w1s, b1s, w2s, b2s), d_out) with bf16 weights and f32 biases.
    Call this outside the per-step hot path (replaces per-call jnp.stack).
    """
    w1A, b1A, w2A, b2A = params_A
    w1B, b1B, w2B, b2B = params_B
    d_in, hidden = w1A.shape
    d_out = w2A.shape[1]
    d_in_p = _round_up(d_in, _LANE)
    h_p = _round_up(hidden, _LANE)
    n_p = _round_up(d_out, _LANE)

    def pad2(w, r, c):
        return jnp.pad(w, ((0, r - w.shape[0]), (0, c - w.shape[1])))

    def pad1(b, c):
        return jnp.pad(b, ((0, c - b.shape[0]),))

    w1s = jnp.stack([pad2(w1A, d_in_p, h_p),
                     pad2(w1B, d_in_p, h_p)]).astype(jnp.bfloat16)
    w2s = jnp.stack([pad2(w2A, h_p, n_p),
                     pad2(w2B, h_p, n_p)]).astype(jnp.bfloat16)
    b1s = jnp.stack([pad1(b1A, h_p),
                     pad1(b1B, h_p)])[:, None, :].astype(jnp.float32)
    b2s = jnp.stack([pad1(b2A, n_p),
                     pad1(b2B, n_p)])[:, None, :].astype(jnp.float32)
    return (w1s, b1s, w2s, b2s), d_out


@functools.partial(
    jax.jit,
    static_argnames=("d_out", "block_b", "block_k", "force_k_tiling",
                     "out_dtype"))
def encoders_forward(xA, xB, w1s, b1s, w2s, b2s, *, d_out,
                     block_b=512, block_k=512, force_k_tiling=False,
                     out_dtype=jnp.float32):
    """Pallas equivalent of _Encoders.forward(xA, xB) -> [yA, yB]."""
    B, d_in = xA.shape
    assert xB.shape == (B, d_in)
    _, d_in_p, h_p = w1s.shape
    n_p = w2s.shape[2]
    assert d_in <= d_in_p and d_out <= n_p

    budget, vmem_limit = _vmem_budgets()
    fused, tm, tk = _choose_config(B, d_in_p, h_p, n_p, budget,
                                   block_b, block_k, force_k_tiling)
    b_p = _round_up(B, tm)

    # Stack + pad + cast to bf16 in one wrapper pass (halves X HBM bytes and
    # the X VMEM double-buffer; removes the in-kernel per-step cast).
    # Callers that can hand over a pre-stacked / pre-padded bf16 array avoid
    # this extra HBM round trip entirely.
    xs = jnp.stack([xA, xB], axis=0).astype(jnp.bfloat16)      # (2, B, d_in)
    xs = jnp.pad(xs, ((0, 0), (0, b_p - B), (0, d_in_p - d_in)))

    out_shape = jax.ShapeDtypeStruct((2, b_p, n_p), out_dtype)

    if fused:
        out = pl.pallas_call(
            _mlp_kernel_fused,
            out_shape=out_shape,
            grid=(2, b_p // tm),
            in_specs=[
                pl.BlockSpec((1, tm, d_in_p), lambda e, i: (e, i, 0)),
                pl.BlockSpec((1, d_in_p, h_p), lambda e, i: (e, 0, 0)),
                pl.BlockSpec((1, 1, h_p), lambda e, i: (e, 0, 0)),
                pl.BlockSpec((1, h_p, n_p), lambda e, i: (e, 0, 0)),
                pl.BlockSpec((1, 1, n_p), lambda e, i: (e, 0, 0)),
            ],
            out_specs=pl.BlockSpec((1, tm, n_p), lambda e, i: (e, i, 0)),
            compiler_params=pltpu.CompilerParams(
                dimension_semantics=("parallel", "parallel"),
                vmem_limit_bytes=vmem_limit),
        )(xs, w1s, b1s, w2s, b2s)
    else:
        out = pl.pallas_call(
            _mlp_kernel_ktiled,
            out_shape=out_shape,
            grid=(2, b_p // tm, d_in_p // tk),
            in_specs=[
                pl.BlockSpec((1, tm, tk), lambda e, i, k: (e, i, k)),
                pl.BlockSpec((1, tk, h_p), lambda e, i, k: (e, k, 0)),
                pl.BlockSpec((1, 1, h_p), lambda e, i, k: (e, 0, 0)),
                pl.BlockSpec((1, h_p, n_p), lambda e, i, k: (e, 0, 0)),
                pl.BlockSpec((1, 1, n_p), lambda e, i, k: (e, 0, 0)),
            ],
            out_specs=pl.BlockSpec((1, tm, n_p), lambda e, i, k: (e, i, 0)),
            scratch_shapes=[pltpu.VMEM((tm, h_p), jnp.float32)],
            compiler_params=pltpu.CompilerParams(
                dimension_semantics=("parallel", "parallel", "arbitrary"),
                vmem_limit_bytes=vmem_limit),
        )(xs, w1s, b1s, w2s, b2s)

    yA = out[0, :B, :d_out]
    yB = out[1, :B, :d_out]
    return [yA, yB]


def _init_encoder_params(key, d_in, hidden, d_out):
    """Deterministic init of one 2-layer MLP encoder (Linear->ReLU->Linear)."""
    k1, k2, k3, k4 = jax.random.split(key, 4)
    lim1 = 1.0 / jnp.sqrt(d_in)
    lim2 = 1.0 / jnp.sqrt(hidden)
    w1 = jax.random.uniform(k1, (d_in, hidden), jnp.float32, -lim1, lim1)
    b1 = jax.random.uniform(k2, (hidden,), jnp.float32, -lim1, lim1)
    w2 = jax.random.uniform(k3, (hidden, d_out), jnp.float32, -lim2, lim2)
    b2 = jax.random.uniform(k4, (d_out,), jnp.float32, -lim2, lim2)
    return (w1, b1, w2, b2)


def _reference_forward_f32(x, params):
    w1, b1, w2, b2 = params
    h = jnp.maximum(x @ w1 + b1, 0.0)
    return h @ w2 + b2


def _reference_forward_bf16(x, params):
    """Mirrors the kernel's precision: bf16 MXU operands, f32 accumulation."""
    w1, b1, w2, b2 = params
    h = jnp.dot(x.astype(jnp.bfloat16), w1.astype(jnp.bfloat16),
                preferred_element_type=jnp.float32) + b1
    h = jnp.maximum(h, 0.0)
    return jnp.dot(h.astype(jnp.bfloat16), w2.astype(jnp.bfloat16),
                   preferred_element_type=jnp.float32) + b2


if __name__ == "__main__":
    # Small shapes, chosen so the K-tiled fallback actually exercises batch
    # tiling and the D_in accumulation loop: with block_b=16, block_k=128 the
    # second call runs grid = (2, 2, 2); the default call uses the fused
    # weight-resident path with grid = (2, 1).
    B, D_in, H, D_out = 32, 256, 96, 48

    key = jax.random.PRNGKey(0)
    kxA, kxB, kpA, kpB = jax.random.split(key, 4)

    xA = jax.random.normal(kxA, (B, D_in), jnp.float32)
    xB = jax.random.normal(kxB, (B, D_in), jnp.float32)

    params_A = _init_encoder_params(kpA, D_in, H, D_out)
    params_B = _init_encoder_params(kpB, D_in, H, D_out)

    # Stack / pad / cast the weights once, outside the hot path.
    (w1s, b1s, w2s, b2s), d_out = prepare_encoder_params(params_A, params_B)

    # Path 1: fused single-shot MLP (weights resident, no K reduction axis).
    yA, yB = encoders_forward(xA, xB, w1s, b1s, w2s, b2s, d_out=d_out)
    jax.block_until_ready(yA)
    jax.block_until_ready(yB)

    # Path 2: K-tiled fallback (exercises batch tiling + the accumulator).
    zA, zB = encoders_forward(xA, xB, w1s, b1s, w2s, b2s, d_out=d_out,
                              block_b=16, block_k=128, force_k_tiling=True)
    jax.block_until_ready(zA)
    jax.block_until_ready(zB)

    refA_bf16 = _reference_forward_bf16(xA, params_A)
    refB_bf16 = _reference_forward_bf16(xB, params_B)
    refA_f32 = _reference_forward_f32(xA, params_A)
    refB_f32 = _reference_forward_f32(xB, params_B)

    for (outA, outB) in ((yA, yB), (zA, zB)):
        assert outA.shape == (B, D_out) and outB.shape == (B, D_out)
        # Tight-ish check against a reference with matching bf16 MXU precision.
        assert jnp.allclose(outA, refA_bf16, atol=1e-2, rtol=1e-2)
        assert jnp.allclose(outB, refB_bf16, atol=1e-2, rtol=1e-2)
        # Looser sanity check against the full-f32 reference.
        assert jnp.allclose(outA, refA_f32, atol=6e-2, rtol=6e-2)
        assert jnp.allclose(outB, refB_f32, atol=6e-2, rtol=6e-2)

    print("KERNEL_OK")
</pallas_src>

<mosaic_0001>
module attributes {stable_mosaic.version = 11 : i64} {
  func.func @_mlp_kernel_fused(%arg0: i32, %arg1: i32, %arg2: memref<1x32x256xbf16, #tpu.memory_space<vmem>>, %arg3: memref<1x256x128xbf16, #tpu.memory_space<vmem>>, %arg4: memref<1x1x128xf32, #tpu.memory_space<vmem>>, %arg5: memref<1x128x128xbf16, #tpu.memory_space<vmem>>, %arg6: memref<1x1x128xf32, #tpu.memory_space<vmem>>, %arg7: memref<1x32x128xf32, #tpu.memory_space<vmem>>) attributes {dimension_semantics = [#tpu.dimension_semantics<parallel>, #tpu.dimension_semantics<parallel>], iteration_bounds = array<i64: 2, 1>, scalar_prefetch = 0 : i64, scratch_operands = 0 : i64, tpu.core_type = #tpu.core_type<tc>, window_params = [{transform_indices = @transform_0, window_bounds = array<i64: 1, 32, 256>}, {transform_indices = @transform_1, window_bounds = array<i64: 1, 256, 128>}, {transform_indices = @transform_2, window_bounds = array<i64: 1, 1, 128>}, {transform_indices = @transform_3, window_bounds = array<i64: 1, 128, 128>}, {transform_indices = @transform_4, window_bounds = array<i64: 1, 1, 128>}, {transform_indices = @transform_5, window_bounds = array<i64: 1, 32, 128>}]} {
    %c0 = arith.constant 0 : index
    %c0_0 = arith.constant 0 : index
    %c0_1 = arith.constant 0 : index
    %0 = vector.load %arg2[%c0, %c0_0, %c0_1] : memref<1x32x256xbf16, #tpu.memory_space<vmem>>, vector<1x32x256xbf16>
    %1 = vector.shape_cast %0 : vector<1x32x256xbf16> to vector<32x256xbf16>
    %c0_2 = arith.constant 0 : index
    %c0_3 = arith.constant 0 : index
    %c0_4 = arith.constant 0 : index
    %2 = vector.load %arg3[%c0_2, %c0_3, %c0_4] : memref<1x256x128xbf16, #tpu.memory_space<vmem>>, vector<1x256x128xbf16>
    %3 = vector.shape_cast %2 : vector<1x256x128xbf16> to vector<256x128xbf16>
    %cst = arith.constant dense<0.000000e+00> : vector<32x128xf32>
    %4 = tpu.matmul %1, %3, %cst {dimension_numbers = #tpu.dot_dimension_numbers<[1], [0], [0], [1], [0, 0, 1, 1], [], []>} : vector<32x256xbf16>, vector<256x128xbf16>, vector<32x128xf32> -> vector<32x128xf32>
    %c0_5 = arith.constant 0 : index
    %c0_6 = arith.constant 0 : index
    %c0_7 = arith.constant 0 : index
    %5 = vector.load %arg4[%c0_5, %c0_6, %c0_7] : memref<1x1x128xf32, #tpu.memory_space<vmem>>, vector<1x1x128xf32>
    %6 = vector.shape_cast %5 : vector<1x1x128xf32> to vector<1x128xf32>
    %7 = vector.broadcast %6 : vector<1x128xf32> to vector<32x128xf32>
    %8 = arith.addf %4, %7 : vector<32x128xf32>
    %cst_8 = arith.constant 0.000000e+00 : f32
    %9 = vector.broadcast %cst_8 : f32 to vector<32x128xf32>
    %10 = arith.maximumf %8, %9 : vector<32x128xf32>
    %11 = arith.truncf %10 : vector<32x128xf32> to vector<32x128xbf16>
    %c0_9 = arith.constant 0 : index
    %c0_10 = arith.constant 0 : index
    %c0_11 = arith.constant 0 : index
    %12 = vector.load %arg5[%c0_9, %c0_10, %c0_11] : memref<1x128x128xbf16, #tpu.memory_space<vmem>>, vector<1x128x128xbf16>
    %13 = vector.shape_cast %12 : vector<1x128x128xbf16> to vector<128x128xbf16>
    %cst_12 = arith.constant dense<0.000000e+00> : vector<32x128xf32>
    %14 = tpu.matmul %11, %13, %cst_12 {dimension_numbers = #tpu.dot_dimension_numbers<[1], [0], [0], [1], [0, 0, 1, 1], [], []>} : vector<32x128xbf16>, vector<128x128xbf16>, vector<32x128xf32> -> vector<32x128xf32>
    %c0_13 = arith.constant 0 : index
    %c0_14 = arith.constant 0 : index
    %c0_15 = arith.constant 0 : index
    %15 = vector.load %arg6[%c0_13, %c0_14, %c0_15] : memref<1x1x128xf32, #tpu.memory_space<vmem>>, vector<1x1x128xf32>
    %16 = vector.shape_cast %15 : vector<1x1x128xf32> to vector<1x128xf32>
    %17 = vector.broadcast %16 : vector<1x128xf32> to vector<32x128xf32>
    %18 = arith.addf %14, %17 : vector<32x128xf32>
    %c0_16 = arith.constant 0 : index
    %c0_17 = arith.constant 0 : index
    %c0_18 = arith.constant 0 : index
    %19 = vector.load %arg7[%c0_16, %c0_17, %c0_18] : memref<1x32x128xf32, #tpu.memory_space<vmem>>, vector<1x32x128xf32>
    %20 = vector.shape_cast %19 : vector<1x32x128xf32> to vector<32x128xf32>
    %21 = vector.shape_cast %18 : vector<32x128xf32> to vector<1x32x128xf32>
    tpu.vector_store %arg7[%c0_16, %c0_17, %c0_18], %21 {strides = array<i32>} : memref<1x32x128xf32, #tpu.memory_space<vmem>>, vector<1x32x128xf32>,
    return
  }
  func.func @transform_0(%arg0: i32, %arg1: i32) -> (i32, i32, i32) {
    %c0_i32 = arith.constant 0 : i32
    %c0_i32_0 = arith.constant 0 : i32
    return %arg0, %arg1, %c0_i32 : i32, i32, i32
  }
  func.func @transform_1(%arg0: i32, %arg1: i32) -> (i32, i32, i32) {
    %c0_i32 = arith.constant 0 : i32
    %c0_i32_0 = arith.constant 0 : i32
    %c0_i32_1 = arith.constant 0 : i32
    return %arg0, %c0_i32, %c0_i32_0 : i32, i32, i32
  }
  func.func @transform_2(%arg0: i32, %arg1: i32) -> (i32, i32, i32) {
    %c0_i32 = arith.constant 0 : i32
    %c0_i32_0 = arith.constant 0 : i32
    %c0_i32_1 = arith.constant 0 : i32
    return %arg0, %c0_i32, %c0_i32_0 : i32, i32, i32
  }
  func.func @transform_3(%arg0: i32, %arg1: i32) -> (i32, i32, i32) {
    %c0_i32 = arith.constant 0 : i32
    %c0_i32_0 = arith.constant 0 : i32
    %c0_i32_1 = arith.constant 0 : i32
    return %arg0, %c0_i32, %c0_i32_0 : i32, i32, i32
  }
  func.func @transform_4(%arg0: i32, %arg1: i32) -> (i32, i32, i32) {
    %c0_i32 = arith.constant 0 : i32
    %c0_i32_0 = arith.constant 0 : i32
    %c0_i32_1 = arith.constant 0 : i32
    return %arg0, %c0_i32, %c0_i32_0 : i32, i32, i32
  }
  func.func @transform_5(%arg0: i32, %arg1: i32) -> (i32, i32, i32) {
    %c0_i32 = arith.constant 0 : i32
    %c0_i32_0 = arith.constant 0 : i32
    return %arg0, %arg1, %c0_i32 : i32, i32, i32
  }
}

</mosaic_0001>

<llo_original>
// kernel: encoders_forward.1
$region0: #{encoders_forward.1}
  #allocation0 [shape = 'u32[]', space=smem, size = 0x4, offset = 0x4, fixed_abs, tag = 'smem constant byte address 0x4 - core index']
  #allocation1 [shape = 'u32[144,128]{1,0:T(1,128)}', space=vmem, size = 0x12000, scoped, tag = 'internal scratch']
  %s0 = inlined_call_operand.vmem [shape: bf16[2,32,256], index: 0, kind: input, shape index: {}]
  %s1 = inlined_call_operand.vmem [shape: bf16[2,256,128], index: 1, kind: input, shape index: {}]
  %s2 = inlined_call_operand.vmem [shape: f32[2,1,128], index: 2, kind: input, shape index: {}]
  %s3 = inlined_call_operand.hbm [shape: bf16[2,128,128], index: 3, kind: input, shape index: {}]
  %s4 = inlined_call_operand.vmem [shape: f32[2,1,128], index: 4, kind: input, shape index: {}]
  %s5 = inlined_call_operand.vmem [shape: f32[2,32,128], index: 5, kind: output, shape index: {}]
  %s6 = sld [smem:[#allocation0]]
  $region57: #{encoders_forward.1} parent=0
    _
  %s8 = ssub.s32 1, %s6
  %s9 = scalar_select 0, %s8, %s6
  $region1: #{encoders_forward.1} parent=0
    #allocation2 [shape = 'u8[65536]{0}', space=vmem, size = 0x10000, scoped, tag = 'input window, operand 3']
    #allocation3 [shape = 's32[2]{0}', space=sflag, size = 0x8, scoped, tag = 'scoped memory for encoders_forward.1']
    %10 = vsyncpa [#allocation3], 0
    %s11 = scalar_lea.sflag [#allocation3], 1
    %12 = vsyncpa %s11, 0
    loop: start=0, step=1, limit=4
    $region2: #{encoders_forward.1} parent=1 // loop_pre_header
      _
    $region3: #{encoders_forward.1} parent=1 // loop_header
      %s14 = sphi 0, %s18
      %p15 = scmp.ge.s32.totalorder %s14, 4
      %s21 = sphi 0, %s33
      %s22 = sphi 0, %s29
      %s23 = sphi 0, %s21
      %s24 = sphi 0, %s22
      %s25 = sphi 0, %s23
      %s26 = sphi 0, %s24
      %s38 = sphi 0, %s40
      %s41 = sphi 0, %s38
      %s42 = sphi 0, %s41
      %s58 = sphi 0, %s42
      %s64 = sphi 0, %s66
      %s67 = sphi 0, %s64
      %s68 = sphi 0, %s67
      %s84 = sphi 0, %s68
      %s90 = sphi 0, %s92
      %s93 = sphi 0, %s90
      %s94 = sphi 0, %s93
      %s110 = sphi 0, %s94
      %s116 = sphi 0, %s118
      %s119 = sphi 0, %s116
      %s120 = sphi 0, %s119
      %s136 = sphi 0, %s120
      %s142 = sphi 0, %s144
      %s145 = sphi 0, %s142
      %s146 = sphi 0, %s145
      %s162 = sphi 0, %s146
      %s170 = sphi 0, %s172
      %s173 = sphi 0, %s170
      %s174 = sphi 0, %s173
      %s190 = sphi 0, %s174
    $region4: #{encoders_forward.1} parent=1 // loop_header_branch
      %17 = sbr.rel (%p15) target = $region8
    $region5: #{encoders_forward.1} parent=1 // loop_body
      %s19 = ssub.s32 %s14, 1
      %s20 = ssub.s32 %s14, 2
      %s27 = sadd.s32 1, %s22
      %p28 = scmp.ge.s32.totalorder %s27, 1
      %s29 = scalar_select %p28, 0, %s27
      %s30 = sadd.s32 1, %s21
      %s31 = scalar_select %p28, %s30, %s21
      %p32 = scmp.ge.s32.totalorder %s31, 2
      %s33 = scalar_select %p32, 0, %s31
      %s34 = ssub.s32 %s21, %s33
      %s35 = ssub.s32 %s22, %s29
      %s36 = sor.u32 %s34, %s35
      %p37 = scmp.eq.s32.totalorder %s36, 0
      %s39 = sadd.s32 %s38, 1
      %s40 = scalar_select %p37, %s38, %s39
      %p43 = pneg %p37
      %p44 = scmp.eq.s32.totalorder %s14, 1
      %p45 = por %p43, %p44
      %p46 = scmp.ne.s32.totalorder %s38, %s41
      %p47 = scmp.eq.s32.totalorder %s14, 0
      %p48 = por %p46, %p47
      %p49 = scmp.ne.s32.totalorder %s38, %s41
      %p50 = scmp.eq.s32.totalorder %s19, 1
      %p51 = por %p49, %p50
      %p52 = scmp.ne.s32.totalorder %s41, %s42
      %p53 = scmp.eq.s32.totalorder %s19, 0
      %p54 = por %p52, %p53
      %p55 = scmp.ne.s32.totalorder %s41, %s42
      %p56 = scmp.eq.s32.totalorder %s20, 1
      %p57 = por %p55, %p56
      %p59 = scmp.ne.s32.totalorder %s42, %s58
      %p60 = scmp.eq.s32.totalorder %s20, 0
      %p61 = por %p59, %p60
      %s62 = ssub.s32 %s21, %s33
      %p63 = scmp.eq.s32.totalorder %s62, 0
      %s65 = sadd.s32 %s64, 1
      %s66 = scalar_select %p63, %s64, %s65
      %p69 = pneg %p63
      %p70 = scmp.eq.s32.totalorder %s14, 1
      %p71 = por %p69, %p70
      %p72 = scmp.ne.s32.totalorder %s64, %s67
      %p73 = scmp.eq.s32.totalorder %s14, 0
      %p74 = por %p72, %p73
      %p75 = scmp.ne.s32.totalorder %s64, %s67
      %p76 = scmp.eq.s32.totalorder %s19, 1
      %p77 = por %p75, %p76
      %p78 = scmp.ne.s32.totalorder %s67, %s68
      %p79 = scmp.eq.s32.totalorder %s19, 0
      %p80 = por %p78, %p79
      %p81 = scmp.ne.s32.totalorder %s67, %s68
      %p82 = scmp.eq.s32.totalorder %s20, 1
      %p83 = por %p81, %p82
      %p85 = scmp.ne.s32.totalorder %s68, %s84
      %p86 = scmp.eq.s32.totalorder %s20, 0
      %p87 = por %p85, %p86
      %s88 = ssub.s32 %s21, %s33
      %p89 = scmp.eq.s32.totalorder %s88, 0
      %s91 = sadd.s32 %s90, 1
      %s92 = scalar_select %p89, %s90, %s91
      %p95 = pneg %p89
      %p96 = scmp.eq.s32.totalorder %s14, 1
      %p97 = por %p95, %p96
      %p98 = scmp.ne.s32.totalorder %s90, %s93
      %p99 = scmp.eq.s32.totalorder %s14, 0
      %p100 = por %p98, %p99
      %p101 = scmp.ne.s32.totalorder %s90, %s93
      %p102 = scmp.eq.s32.totalorder %s19, 1
      %p103 = por %p101, %p102
      %p104 = scmp.ne.s32.totalorder %s93, %s94
      %p105 = scmp.eq.s32.totalorder %s19, 0
      %p106 = por %p104, %p105
      %p107 = scmp.ne.s32.totalorder %s93, %s94
      %p108 = scmp.eq.s32.totalorder %s20, 1
      %p109 = por %p107, %p108
      %p111 = scmp.ne.s32.totalorder %s94, %s110
      %p112 = scmp.eq.s32.totalorder %s20, 0
      %p113 = por %p111, %p112
      %s114 = ssub.s32 %s21, %s33
      %p115 = scmp.eq.s32.totalorder %s114, 0
      %s117 = sadd.s32 %s116, 1
      %s118 = scalar_select %p115, %s116, %s117
      %p121 = pneg %p115
      %p122 = scmp.eq.s32.totalorder %s14, 1
      %p123 = por %p121, %p122
      %p124 = scmp.ne.s32.totalorder %s116, %s119
      %p125 = scmp.eq.s32.totalorder %s14, 0
      %p126 = por %p124, %p125
      %p127 = scmp.ne.s32.totalorder %s116, %s119
      %p128 = scmp.eq.s32.totalorder %s19, 1
      %p129 = por %p127, %p128
      %p130 = scmp.ne.s32.totalorder %s119, %s120
      %p131 = scmp.eq.s32.totalorder %s19, 0
      %p132 = por %p130, %p131
      %p133 = scmp.ne.s32.totalorder %s119, %s120
      %p134 = scmp.eq.s32.totalorder %s20, 1
      %p135 = por %p133, %p134
      %p137 = scmp.ne.s32.totalorder %s120, %s136
      %p138 = scmp.eq.s32.totalorder %s20, 0
      %p139 = por %p137, %p138
      %s140 = ssub.s32 %s21, %s33
      %p141 = scmp.eq.s32.totalorder %s140, 0
      %s143 = sadd.s32 %s142, 1
      %s144 = scalar_select %p141, %s142, %s143
      %p147 = pneg %p141
      %p148 = scmp.eq.s32.totalorder %s14, 1
      %p149 = por %p147, %p148
      %p150 = scmp.ne.s32.totalorder %s142, %s145
      %p151 = scmp.eq.s32.totalorder %s14, 0
      %p152 = por %p150, %p151
      %p153 = scmp.ne.s32.totalorder %s142, %s145
      %p154 = scmp.eq.s32.totalorder %s19, 1
      %p155 = por %p153, %p154
      %p156 = scmp.ne.s32.totalorder %s145, %s146
      %p157 = scmp.eq.s32.totalorder %s19, 0
      %p158 = por %p156, %p157
      %p159 = scmp.ne.s32.totalorder %s145, %s146
      %p160 = scmp.eq.s32.totalorder %s20, 1
      %p161 = por %p159, %p160
      %p163 = scmp.ne.s32.totalorder %s146, %s162
      %p164 = scmp.eq.s32.totalorder %s20, 0
      %p165 = por %p163, %p164
      %s166 = ssub.s32 %s21, %s33
      %s167 = ssub.s32 %s22, %s29
      %s168 = sor.u32 %s166, %s167
      %p169 = scmp.eq.s32.totalorder %s168, 0
      %s171 = sadd.s32 %s170, 1
      %s172 = scalar_select %p169, %s170, %s171
      %p175 = pneg %p169
      %p176 = scmp.eq.s32.totalorder %s14, 1
      %p177 = por %p175, %p176
      %p178 = scmp.ne.s32.totalorder %s170, %s173
      %p179 = scmp.eq.s32.totalorder %s14, 0
      %p180 = por %p178, %p179
      %p181 = scmp.ne.s32.totalorder %s170, %s173
      %p182 = scmp.eq.s32.totalorder %s19, 1
      %p183 = por %p181, %p182
      %p184 = scmp.ne.s32.totalorder %s173, %s174
      %p185 = scmp.eq.s32.totalorder %s19, 0
      %p186 = por %p184, %p185
      %p187 = scmp.ne.s32.totalorder %s173, %s174
      %p188 = scmp.eq.s32.totalorder %s20, 1
      %p189 = por %p187, %p188
      %p191 = scmp.ne.s32.totalorder %s174, %s190
      %p192 = scmp.eq.s32.totalorder %s20, 0
      %p193 = por %p191, %p192
      %p194 = scmp.le.s32.totalorder 1, %s14
      %p195 = scmp.lt.s32.totalorder %s14, 3
      %p196 = pnand %p194, %p195
      %p197 = pneg %p196
      // Predicated region
      $region9: #{encoders_forward.1} parent=5 // pred_check
        _
      $region10: #{encoders_forward.1} parent=5 // pred_check_branch
        %199 = sbr.rel (%p196) target = $region12
      $region11: #{encoders_forward.1} parent=5 // pred_region
        %s200 = ssub.s32 %s14, 1
      $region12: #{encoders_forward.1} parent=5 // pred_fallthru
        _
      %p201 = scmp.lt.s32.totalorder %s14, 2
      // Predicated region
      $region13: #{encoders_forward.1} parent=5 // pred_check
        %p202 = pneg %p201
      $region14: #{encoders_forward.1} parent=5 // pred_check_branch
        %204 = sbr.rel (%p202) target = $region16
      $region15: #{encoders_forward.1} parent=5 // pred_region
        // Predicated region
        $region17: #{encoders_forward.1} parent=15 // pred_check
          %p205 = pneg %p48
        $region18: #{encoders_forward.1} parent=15 // pred_check_branch
          %207 = sbr.rel (%p205) target = $region20
        $region19: #{encoders_forward.1} parent=15 // pred_region
          %s208 = smul.u32 4, %s22
          %p209 = scmp.lt.s32.totalorder %s21, 1
          %s210 = scalar_select %p209, %s21, 1
          %p211 = scmp.lt.s32.totalorder %s208, 3
          %s212 = scalar_select %p211, %s208, 3
          %s213 = smul.addr %s212, 2
          %s214 = smul.addr %s210, 8
          %s215 = sadd.s32 %s213, %s214
          %s216 = smul.addr %s215, 4
          %s217 = scalar_lea.vmem %s0, %s216
          %s218 = smul.u32 4, %s22
        $region20: #{encoders_forward.1} parent=15 // pred_fallthru
          _
        // Predicated region
        $region21: #{encoders_forward.1} parent=15 // pred_check
          %p219 = pneg %p74
        $region22: #{encoders_forward.1} parent=15 // pred_check_branch
          %221 = sbr.rel (%p219) target = $region24
        $region23: #{encoders_forward.1} parent=15 // pred_region
          %p222 = scmp.lt.s32.totalorder %s21, 1
          %s223 = scalar_select %p222, %s21, 1
          %s224 = smul.addr %s223, 32
          %s225 = smul.addr %s224, 4
          %s226 = scalar_lea.vmem %s1, %s225
        $region24: #{encoders_forward.1} parent=15 // pred_fallthru
          _
        // Predicated region
        $region25: #{encoders_forward.1} parent=15 // pred_check
          %p227 = pneg %p100
        $region26: #{encoders_forward.1} parent=15 // pred_check_branch
          %229 = sbr.rel (%p227) target = $region28
        $region27: #{encoders_forward.1} parent=15 // pred_region
          %p230 = scmp.lt.s32.totalorder %s21, 1
          %s231 = scalar_select %p230, %s21, 1
          %s232 = scalar_lea.vmem %s2, %s231
        $region28: #{encoders_forward.1} parent=15 // pred_fallthru
          _
        // Predicated region
        $region29: #{encoders_forward.1} parent=15 // pred_check
          %p233 = pneg %p126
        $region30: #{encoders_forward.1} parent=15 // pred_check_branch
          %235 = sbr.rel (%p233) target = $region32
        $region31: #{encoders_forward.1} parent=15 // pred_region
          %s236 = sand.u32 %s116, 1
          %s237 = scalar_lea.sflag [#allocation3], %s236
          %s238 = sand.u32 %s116, 1
          %s239 = smul.addr %s238, 64
          %s240 = scalar_lea.vmem [#allocation2], %s239
          %s242 = ssub.s32 1024, 1024
          %243 = vsyncadd %s237, %s242
          %s244 = smul.addr %s21, 16
          %s245 = smul.addr %s244, 64
          %s246 = scalar_lea.hbm %s3, %s245
          %s247 = sshll.u32 %s240, 4
          %s248 = int_to_ptr.vmem [resolvable:$true] %s247
          %253 = dma.hbm_to_vmem [thread:$0]  %s246, 1024, %s248, %s237, 64, 64, 4
        $region32: #{encoders_forward.1} parent=15 // pred_fallthru
          _
        // Predicated region
        $region33: #{encoders_forward.1} parent=15 // pred_check
          %p254 = pneg %p152
        $region34: #{encoders_forward.1} parent=15 // pred_check_branch
          %256 = sbr.rel (%p254) target = $region36
        $region35: #{encoders_forward.1} parent=15 // pred_region
          %p257 = scmp.lt.s32.totalorder %s21, 1
          %s258 = scalar_select %p257, %s21, 1
          %s259 = scalar_lea.vmem %s4, %s258
        $region36: #{encoders_forward.1} parent=15 // pred_fallthru
          _
      $region16: #{encoders_forward.1} parent=5 // pred_fallthru
        _
      %p260 = scmp.le.s32.totalorder 1, %s14
      %p261 = scmp.lt.s32.totalorder %s14, 3
      %p262 = pnand %p260, %p261
      %p263 = pneg %p262
      // Predicated region
      $region37: #{encoders_forward.1} parent=5 // pred_check
        _
      $region38: #{encoders_forward.1} parent=5 // pred_check_branch
        %265 = sbr.rel (%p262) target = $region40
      $region39: #{encoders_forward.1} parent=5 // pred_region
        %s266 = ssub.s32 %s14, 1
        %s267 = sand.u32 %s119, 1
        %s268 = scalar_lea.sflag [#allocation3], %s267
        %s269 = sand.u32 %s119, 1
        %s270 = smul.addr %s269, 64
        %s271 = scalar_lea.vmem [#allocation2], %s270
        // Predicated region
        $region41: #{encoders_forward.1} parent=39 // pred_check
          %p272 = pneg %p132
        $region42: #{encoders_forward.1} parent=39 // pred_check_branch
          %274 = sbr.rel (%p272) target = $region44
        $region43: #{encoders_forward.1} parent=39 // pred_region
          %275 = dma.done %s268, 1024
        $region44: #{encoders_forward.1} parent=39 // pred_fallthru
          _
        %s276 = smul.u32 4, %s24
        %p277 = scmp.lt.s32.totalorder %s23, 1
        %s278 = scalar_select %p277, %s23, 1
        %p279 = scmp.lt.s32.totalorder %s276, 3
        %s280 = scalar_select %p279, %s276, 3
        %s281 = smul.addr %s280, 2
        %s282 = smul.addr %s278, 8
        %s283 = sadd.s32 %s281, %s282
        %s284 = smul.addr %s283, 4
        %s285 = scalar_lea.vmem %s0, %s284
        %p286 = pneg %p54
        %p287 = pneg %p51
        %p288 = scmp.lt.s32.totalorder %s23, 1
        %s289 = scalar_select %p288, %s23, 1
        %s290 = smul.addr %s289, 32
        %s291 = smul.addr %s290, 4
        %s292 = scalar_lea.vmem %s1, %s291
        %p293 = pneg %p80
        %p294 = pneg %p77
        %p295 = scmp.lt.s32.totalorder %s23, 1
        %s296 = scalar_select %p295, %s23, 1
        %s297 = scalar_lea.vmem %s2, %s296
        %p298 = pneg %p106
        %p299 = pneg %p103
        %s300 = sand.u32 %s119, 1
        %s301 = scalar_lea.sflag [#allocation3], %s300
        %s302 = sand.u32 %s119, 1
        %s303 = smul.addr %s302, 64
        %s304 = scalar_lea.vmem [#allocation2], %s303
        %p305 = pneg %p132
        %p306 = pneg %p129
        %p307 = scmp.lt.s32.totalorder %s23, 1
        %s308 = scalar_select %p307, %s23, 1
        %s309 = scalar_lea.vmem %s4, %s308
        %p310 = pneg %p158
        %p311 = pneg %p155
        %p312 = pneg %p186
        %p313 = pneg %p183
        %s314 = smul.u32 4, %s24
        %p315 = scmp.lt.s32.totalorder %s23, 1
        %s316 = scalar_select %p315, %s23, 1
        %p317 = scmp.lt.s32.totalorder %s314, 3
        %s318 = scalar_select %p317, %s314, 3
        %s319 = smul.addr %s316, 4
        %s320 = sadd.s32 %s318, %s319
        %s321 = smul.addr %s320, 8
        %s322 = scalar_lea.vmem %s5, %s321
        %s323 = smul.u32 4, %s24
        %p324 = scmp.lt.s32.totalorder %s23, 1
        %s325 = scalar_select %p324, %s23, 1
        %p326 = scmp.lt.s32.totalorder %s323, 3
        %s327 = scalar_select %p326, %s323, 3
        %s328 = smul.addr %s327, 2
        %s329 = smul.addr %s325, 8
        %s330 = sadd.s32 %s328, %s329
        %s331 = smul.addr %s330, 4
        %s332 = scalar_lea.vmem %s0, %s331
        %s333 = smul.u32 4, %s24
        %p334 = scmp.lt.s32.totalorder %s23, 1
        %s335 = scalar_select %p334, %s23, 1
        %s336 = smul.addr %s335, 32
        %s337 = smul.addr %s336, 4
        %s338 = scalar_lea.vmem %s1, %s337
        %p339 = scmp.lt.s32.totalorder %s23, 1
        %s340 = scalar_select %p339, %s23, 1
        %s341 = scalar_lea.vmem %s2, %s340
        %p342 = scmp.lt.s32.totalorder %s23, 1
        %s343 = scalar_select %p342, %s23, 1
        %s344 = scalar_lea.vmem %s4, %s343
        %s345 = smul.u32 4, %s24
        %p346 = scmp.lt.s32.totalorder %s23, 1
        %s347 = scalar_select %p346, %s23, 1
        %p348 = scmp.lt.s32.totalorder %s345, 3
        %s349 = scalar_select %p348, %s345, 3
        %s350 = smul.addr %s347, 4
        %s351 = sadd.s32 %s349, %s350
        %s352 = smul.addr %s351, 8
        %s353 = scalar_lea.vmem %s5, %s352
        %s354 = smul.u32 4, %s24
        %v356 = vld [vmem:[%s332] sm:$0xff]
        %v357 = vld [vmem:[%s332 + $0x8] sm:$0xff]
        %v358 = vld [vmem:[%s332 + $0x10] sm:$0xff]
        %v359 = vld [vmem:[%s332 + $0x18] sm:$0xff]
        %v360 = vld [vmem:[%s338] sm:$0xf]
        %v361 = vld [vmem:[%s338 + $0x4] sm:$0xf]
        %v362 = vld [vmem:[%s338 + $0x8] sm:$0xf]
        %v363 = vld [vmem:[%s338 + $0xc] sm:$0xf]
        %v364 = vld [vmem:[%s338 + $0x10] sm:$0xf]
        %v365 = vld [vmem:[%s338 + $0x14] sm:$0xf]
        %v366 = vld [vmem:[%s338 + $0x18] sm:$0xf]
        %v367 = vld [vmem:[%s338 + $0x1c] sm:$0xf]
        %v368 = vld [vmem:[%s338 + $0x20] sm:$0xf]
        %v369 = vld [vmem:[%s338 + $0x24] sm:$0xf]
        %v370 = vld [vmem:[%s338 + $0x28] sm:$0xf]
        %v371 = vld [vmem:[%s338 + $0x2c] sm:$0xf]
        %v372 = vld [vmem:[%s338 + $0x30] sm:$0xf]
        %v373 = vld [vmem:[%s338 + $0x34] sm:$0xf]
        %v374 = vld [vmem:[%s338 + $0x38] sm:$0xf]
        %v375 = vld [vmem:[%s338 + $0x3c] sm:$0xf]
        %v376 = vld [vmem:[%s338 + $0x40] sm:$0xf]
        %v377 = vld [vmem:[%s338 + $0x44] sm:$0xf]
        %v378 = vld [vmem:[%s338 + $0x48] sm:$0xf]
        %v379 = vld [vmem:[%s338 + $0x4c] sm:$0xf]
        %v380 = vld [vmem:[%s338 + $0x50] sm:$0xf]
        %v381 = vld [vmem:[%s338 + $0x54] sm:$0xf]
        %v382 = vld [vmem:[%s338 + $0x58] sm:$0xf]
        %v383 = vld [vmem:[%s338 + $0x5c] sm:$0xf]
        %v384 = vld [vmem:[%s338 + $0x60] sm:$0xf]
        %v385 = vld [vmem:[%s338 + $0x64] sm:$0xf]
        %v386 = vld [vmem:[%s338 + $0x68] sm:$0xf]
        %v387 = vld [vmem:[%s338 + $0x6c] sm:$0xf]
        %v388 = vld [vmem:[%s338 + $0x70] sm:$0xf]
        %v389 = vld [vmem:[%s338 + $0x74] sm:$0xf]
        %v390 = vld [vmem:[%s338 + $0x78] sm:$0xf]
        %v391 = vld [vmem:[%s338 + $0x7c] sm:$0xf]
        %v392 = vld [vmem:[%s341] sm:$0x1]
        %v394 = vlaneseq
        %v395 = vshrl.u32 %v394, 7
        %v396 = vsub.s32 0, %v395
        %v397 = vrot.slane %v392, %v396
        %v403 = vunpack.c.l.b16 %v356
        %v404 = vunpack.c.h.b16 %v356
        %v405 = vunpack.c.l.b16 %v357
        %v406 = vunpack.c.h.b16 %v357
        %v407 = vunpack.c.l.b16 %v358
        %v408 = vunpack.c.h.b16 %v358
        %v409 = vunpack.c.l.b16 %v359
        %v410 = vunpack.c.h.b16 %v359
        %v411 = vpack.c.b16 %v405, %v403
        %v412 = vpack.c.b16 %v406, %v404
        %v413 = vpack.c.b16 %v409, %v407
        %v414 = vpack.c.b16 %v410, %v408
        %v451 = vunpack.c.l.b16 %v360
        %v452 = vunpack.c.l.b16 %v361
        %v453 = vunpack.c.l.b16 %v362
        %v454 = vunpack.c.l.b16 %v363
        %v455 = vunpack.c.l.b16 %v364
        %v456 = vunpack.c.l.b16 %v365
        %v457 = vunpack.c.l.b16 %v366
        %v458 = vunpack.c.l.b16 %v367
        %v459 = vunpack.c.l.b16 %v368
        %v460 = vunpack.c.l.b16 %v369
        %v461 = vunpack.c.l.b16 %v370
        %v462 = vunpack.c.l.b16 %v371
        %v463 = vunpack.c.l.b16 %v372
        %v464 = vunpack.c.l.b16 %v373
        %v465 = vunpack.c.l.b16 %v374
        %v466 = vunpack.c.l.b16 %v375
        %v467 = vunpack.c.l.b16 %v376
        %v468 = vunpack.c.l.b16 %v377
        %v469 = vunpack.c.l.b16 %v378
        %v470 = vunpack.c.l.b16 %v379
        %v471 = vunpack.c.l.b16 %v380
        %v472 = vunpack.c.l.b16 %v381
        %v473 = vunpack.c.l.b16 %v382
        %v474 = vunpack.c.l.b16 %v383
        %v475 = vunpack.c.l.b16 %v384
        %v476 = vunpack.c.l.b16 %v385
        %v477 = vunpack.c.l.b16 %v386
        %v478 = vunpack.c.l.b16 %v387
        %v479 = vunpack.c.l.b16 %v388
        %v480 = vunpack.c.l.b16 %v389
        %v481 = vunpack.c.l.b16 %v390
        %v482 = vunpack.c.l.b16 %v391
        %v483 = vpack.c.b16 %v452, %v451
        %v484 = vpack.c.b16 %v454, %v453
        %v485 = vpack.c.b16 %v456, %v455
        %v486 = vpack.c.b16 %v458, %v457
        %v487 = vpack.c.b16 %v460, %v459
        %v488 = vpack.c.b16 %v462, %v461
        %v489 = vpack.c.b16 %v464, %v463
        %v490 = vpack.c.b16 %v466, %v465
        %v491 = vpack.c.b16 %v468, %v467
        %v492 = vpack.c.b16 %v470, %v469
        %v493 = vpack.c.b16 %v472, %v471
        %v494 = vpack.c.b16 %v474, %v473
        %v495 = vpack.c.b16 %v476, %v475
        %v496 = vpack.c.b16 %v478, %v477
        %v497 = vpack.c.b16 %v480, %v479
        %v498 = vpack.c.b16 %v482, %v481
        %515 = vmatprep.subr.bf16.mxu0 0
        %516 = vmatpush1.bf16.msra.mxu0 %v490
        %517 = vmatprep.subr.bf16.mxu0 0
        %518 = vmatpush1.bf16.msra.mxu0 %v489
        %519 = vmatprep.subr.bf16.mxu0 0
        %520 = vmatpush1.bf16.msra.mxu0 %v488
        %521 = vmatprep.subr.bf16.mxu0 0
        %522 = vmatpush1.bf16.msra.mxu0 %v487
        %523 = vmatprep.subr.bf16.mxu0 0
        %524 = vmatpush1.bf16.msra.mxu0 %v486
        %525 = vmatprep.subr.bf16.mxu0 0
        %526 = vmatpush1.bf16.msra.mxu0 %v485
        %527 = vmatprep.subr.bf16.mxu0 0
        %528 = vmatpush1.bf16.msra.mxu0 %v484
        %529 = vmatprep.subr.bf16.mxu0 0
        %530 = vmatpush1.bf16.msra.mxu0 %v483
        %531 = vmatprep.subr.bf16.mxu0 0
        %532 = vmatpush2.bf16.msra.mxu0 %v498
        %533 = vmatprep.subr.bf16.mxu0 0
        %534 = vmatpush2.bf16.msra.mxu0 %v497
        %535 = vmatprep.subr.bf16.mxu0 0
        %536 = vmatpush2.bf16.msra.mxu0 %v496
        %537 = vmatprep.subr.bf16.mxu0 0
        %538 = vmatpush2.bf16.msra.mxu0 %v495
        %539 = vmatprep.subr.bf16.mxu0 0
        %540 = vmatpush2.bf16.msra.mxu0 %v494
        %541 = vmatprep.subr.bf16.mxu0 0
        %542 = vmatpush2.bf16.msra.mxu0 %v493
        %543 = vmatprep.subr.bf16.mxu0 0
        %544 = vmatpush2.bf16.msra.mxu0 %v492
        %545 = vmatprep.subr.bf16.mxu0 0
        %546 = vmatpush2.bf16.msra.mxu0 %v491
        %547 = vmatprep.mubr.bf16.mxu0 %v412
        %548 = vmatmul.mubr.bf16.gmra.mxu0 %v411
        %v549 = vpop.f32.mrf.mxu0
        %v550 = vadd.f32 %v397, %v549
        %v551 = vpop.f32.mrf.mxu0
        %v552 = vpop.f32.mrf.mxu0
        %v553 = vadd.f32 %v397, %v552
        %v554 = vpop.f32.mrf.mxu0
        %555 = vmatprep.mubr.bf16.mxu0 %v414
        %556 = vmatmul.mubr.bf16.gmra.mxu0 %v413
        %v557 = vpop.f32.mrf.mxu0
        %v558 = vadd.f32 %v397, %v557
        %v559 = vpop.f32.mrf.mxu0
        %v560 = vpop.f32.mrf.mxu0
        %v561 = vadd.f32 %v397, %v560
        %v562 = vpop.f32.mrf.mxu0
        %563 = vdwg.mxu0
        %v564 = vmax.f32 %v550, 0.0
        %v565 = vmax.f32 %v553, 0.0
        %v566 = vmax.f32 %v558, 0.0
        %v567 = vmax.f32 %v561, 0.0
        %v568 = vpack.c.bf16 %v565, %v564
        %v569 = vpack.c.bf16 %v567, %v566
        %v570 = vld [vmem:[%s271] sm:$0xf]
        %v571 = vld [vmem:[%s271 + $0x4] sm:$0xf]
        %v572 = vld [vmem:[%s271 + $0x8] sm:$0xf]
        %v573 = vld [vmem:[%s271 + $0xc] sm:$0xf]
        %v574 = vld [vmem:[%s271 + $0x10] sm:$0xf]
        %v575 = vld [vmem:[%s271 + $0x14] sm:$0xf]
        %v576 = vld [vmem:[%s271 + $0x18] sm:$0xf]
        %v577 = vld [vmem:[%s271 + $0x1c] sm:$0xf]
        %v578 = vld [vmem:[%s271 + $0x20] sm:$0xf]
        %v579 = vld [vmem:[%s271 + $0x24] sm:$0xf]
        %v580 = vld [vmem:[%s271 + $0x28] sm:$0xf]
        %v581 = vld [vmem:[%s271 + $0x2c] sm:$0xf]
        %v582 = vld [vmem:[%s271 + $0x30] sm:$0xf]
        %v583 = vld [vmem:[%s271 + $0x34] sm:$0xf]
        %v584 = vld [vmem:[%s271 + $0x38] sm:$0xf]
        %v585 = vld [vmem:[%s271 + $0x3c] sm:$0xf]
        %v586 = vld [vmem:[%s344] sm:$0x1]
        %v588 = vlaneseq
        %v589 = vshrl.u32 %v588, 7
        %v590 = vsub.s32 0, %v589
        %v591 = vrot.slane %v586, %v590
        %v609 = vunpack.c.l.b16 %v570
        %v610 = vunpack.c.l.b16 %v571
        %v611 = vunpack.c.l.b16 %v572
        %v612 = vunpack.c.l.b16 %v573
        %v613 = vunpack.c.l.b16 %v574
        %v614 = vunpack.c.l.b16 %v575
        %v615 = vunpack.c.l.b16 %v576
        %v616 = vunpack.c.l.b16 %v577
        %v617 = vunpack.c.l.b16 %v578
        %v618 = vunpack.c.l.b16 %v579
        %v619 = vunpack.c.l.b16 %v580
        %v620 = vunpack.c.l.b16 %v581
        %v621 = vunpack.c.l.b16 %v582
        %v622 = vunpack.c.l.b16 %v583
        %v623 = vunpack.c.l.b16 %v584
        %v624 = vunpack.c.l.b16 %v585
        %v625 = vpack.c.b16 %v610, %v609
        %v626 = vpack.c.b16 %v612, %v611
        %v627 = vpack.c.b16 %v614, %v613
        %v628 = vpack.c.b16 %v616, %v615
        %v629 = vpack.c.b16 %v618, %v617
        %v630 = vpack.c.b16 %v620, %v619
        %v631 = vpack.c.b16 %v622, %v621
        %v632 = vpack.c.b16 %v624, %v623
        %641 = vmatprep.subr.bf16.mxu0 0
        %642 = vmatpush1.bf16.msra.mxu0 %v632
        %643 = vmatprep.subr.bf16.mxu0 0
        %644 = vmatpush1.bf16.msra.mxu0 %v631
        %645 = vmatprep.subr.bf16.mxu0 0
        %646 = vmatpush1.bf16.msra.mxu0 %v630
        %647 = vmatprep.subr.bf16.mxu0 0
        %648 = vmatpush1.bf16.msra.mxu0 %v629
        %649 = vmatprep.subr.bf16.mxu0 0
        %650 = vmatpush1.bf16.msra.mxu0 %v628
        %651 = vmatprep.subr.bf16.mxu0 0
        %652 = vmatpush1.bf16.msra.mxu0 %v627
        %653 = vmatprep.subr.bf16.mxu0 0
        %654 = vmatpush1.bf16.msra.mxu0 %v626
        %655 = vmatprep.subr.bf16.mxu0 0
        %656 = vmatpush1.bf16.msra.mxu0 %v625
        %657 = vmatprep.subr.bf16.mxu0 0
        %658 = vmatpush2.bf16.msra.mxu0 0
        %659 = vmatprep.subr.bf16.mxu0 0
        %660 = vmatpush2.bf16.msra.mxu0 0
        %661 = vmatprep.subr.bf16.mxu0 0
        %662 = vmatpush2.bf16.msra.mxu0 0
        %663 = vmatprep.subr.bf16.mxu0 0
        %664 = vmatpush2.bf16.msra.mxu0 0
        %665 = vmatprep.subr.bf16.mxu0 0
        %666 = vmatpush2.bf16.msra.mxu0 0
        %667 = vmatprep.subr.bf16.mxu0 0
        %668 = vmatpush2.bf16.msra.mxu0 0
        %669 = vmatprep.subr.bf16.mxu0 0
        %670 = vmatpush2.bf16.msra.mxu0 0
        %671 = vmatprep.subr.bf16.mxu0 0
        %672 = vmatpush2.bf16.msra.mxu0 0
        %673 = vmatprep.mubr.bf16.mxu0 0
        %674 = vmatmul.mubr.bf16.gmra.mxu0 %v568
        %v675 = vpop.f32.mrf.mxu0
        %v676 = vadd.f32 %v591, %v675
        %v677 = vpop.f32.mrf.mxu0
        %v678 = vpop.f32.mrf.mxu0
        %v679 = vadd.f32 %v591, %v678
        %v680 = vpop.f32.mrf.mxu0
        %681 = vmatprep.mubr.bf16.mxu0 0
        %682 = vmatmul.mubr.bf16.gmra.mxu0 %v569
        %v683 = vpop.f32.mrf.mxu0
        %v684 = vadd.f32 %v591, %v683
        %v685 = vpop.f32.mrf.mxu0
        %v686 = vpop.f32.mrf.mxu0
        %v687 = vadd.f32 %v591, %v686
        %v688 = vpop.f32.mrf.mxu0
        %689 = vdwg.mxu0
        %690 = vst [vmem:[%s353] sm:$0xff] %v676
        %691 = vst [vmem:[%s353 + $0x8] sm:$0xff] %v679
        %692 = vst [vmem:[%s353 + $0x10] sm:$0xff] %v684
        %693 = vst [vmem:[%s353 + $0x18] sm:$0xff] %v687
        %s694 = smul.u32 4, %s24
        %p695 = scmp.lt.s32.totalorder %s23, 1
        %s696 = scalar_select %p695, %s23, 1
        %p697 = scmp.lt.s32.totalorder %s694, 3
        %s698 = scalar_select %p697, %s694, 3
        %s699 = smul.addr %s696, 4
        %s700 = sadd.s32 %s698, %s699
        %s701 = smul.addr %s700, 8
        %s702 = scalar_lea.vmem %s5, %s701
        // Predicated region
        $region45: #{encoders_forward.1} parent=39 // pred_check
          %p703 = pneg %p183
        $region46: #{encoders_forward.1} parent=39 // pred_check_branch
          %705 = sbr.rel (%p703) target = $region48
        $region47: #{encoders_forward.1} parent=39 // pred_region
          %s706 = smul.u32 4, %s24
        $region48: #{encoders_forward.1} parent=39 // pred_fallthru
          _
      $region40: #{encoders_forward.1} parent=5 // pred_fallthru
        _
      %p707 = scmp.le.s32.totalorder 2, %s14
      // Predicated region
      $region49: #{encoders_forward.1} parent=5 // pred_check
        %p708 = pneg %p707
      $region50: #{encoders_forward.1} parent=5 // pred_check_branch
        %710 = sbr.rel (%p708) target = $region52
      $region51: #{encoders_forward.1} parent=5 // pred_region
        %s711 = ssub.s32 %s14, 2
        // Predicated region
        $region53: #{encoders_forward.1} parent=51 // pred_check
          %p712 = pneg %p189
        $region54: #{encoders_forward.1} parent=51 // pred_check_branch
          %714 = sbr.rel (%p712) target = $region56
        $region55: #{encoders_forward.1} parent=51 // pred_region
          %s715 = smul.u32 4, %s26
          %p716 = scmp.lt.s32.totalorder %s25, 1
          %s717 = scalar_select %p716, %s25, 1
          %p718 = scmp.lt.s32.totalorder %s715, 3
          %s719 = scalar_select %p718, %s715, 3
          %s720 = smul.addr %s717, 4
          %s721 = sadd.s32 %s719, %s720
          %s722 = smul.addr %s721, 8
          %s723 = scalar_lea.vmem %s5, %s722
        $region56: #{encoders_forward.1} parent=51 // pred_fallthru
          _
      $region52: #{encoders_forward.1} parent=5 // pred_fallthru
        _
    $region6: #{encoders_forward.1} parent=1 // loop_footer
      %s18 = sadd.s32 1, %s14
    $region7: #{encoders_forward.1} parent=1 // loop_footer_branch
      %13 = sbr.rel target = $region3
    $region8: #{encoders_forward.1} parent=1 // loop_exit
      _
    %724 = vsyncpa [#allocation3], 1
    %s725 = scalar_lea.sflag [#allocation3], 1
    %726 = vsyncpa %s725, 1

</llo_original>
